<compile_context>
chip_gen: v7x
topology: tpu7x:2x2x1
jax: 0.10.0
libtpu: 0.0.40
codegen_flags: <defaults>
</compile_context>

<pallas_src>
import functools

import jax
import jax.numpy as jnp
from jax.experimental import pallas as pl
from jax.experimental.pallas import tpu as pltpu

_SUBLANE = 8  # batch tile must be a multiple of the sublane granule


def _round_up(n, m):
    return ((n + m - 1) // m) * m


def _cdiv(a, b):
    return (a + b - 1) // b


def _slp_kernel(x_ref, w_ref, b_ref, o_ref):
    # Linear: z = x @ W + b. Cast the streamed x tile to the weight dtype at
    # vreg level (free VPU work) so the MXU runs at native bf16 rate when the
    # weight is bf16; accumulate in f32 on the MXU.
    x = x_ref[...].astype(w_ref.dtype)
    z = jnp.dot(x, w_ref[...], preferred_element_type=jnp.float32)
    z = z + b_ref[...]  # (1, Out) f32 bias broadcasts over the batch tile.

    # Numerically stable log-softmax along dim 1, all in f32.
    m = jnp.max(z, axis=1, keepdims=True)
    shifted = z - m
    lse = jnp.log(jnp.sum(jnp.exp(shifted), axis=1, keepdims=True))
    o_ref[...] = (shifted - lse).astype(o_ref.dtype)


@functools.partial(jax.jit, static_argnames=("block_b", "matmul_dtype"))
def single_layer_perception(x, w, b, *, block_b=1024, matmul_dtype=jnp.bfloat16):
    """x: [B, In], w: [In, Out], b: [Out] -> log-probs [B, Out] (float32).

    For repeated inference pre-cast `w` to `matmul_dtype` once at init (the
    wrapper only casts if the dtype does not already match).
    """
    B, In = x.shape
    In_w, Out = w.shape
    assert In_w == In, "weight must be [input_size, output_size]"

    # Lazily cast the weight to the matmul dtype (callers should hoist this).
    if matmul_dtype is not None and w.dtype != matmul_dtype:
        w = w.astype(matmul_dtype)
    b2 = b.astype(jnp.float32).reshape(1, Out)

    # ---- Batch tile selection -------------------------------------------------
    # Multiple of 8 sublanes, as large as block_b allows, but capped so the grid
    # has >= 2 steps whenever the batch permits (keeps both v7x TensorCores busy
    # and the DMA pipeline primed).
    b8 = _round_up(B, _SUBLANE)
    tb = min(block_b, b8)
    if b8 > _SUBLANE:
        tb = min(tb, _round_up(_cdiv(b8, 2), _SUBLANE))
    tb = max(_SUBLANE, _round_up(tb, _SUBLANE))
    b_p = _round_up(B, tb)
    if b_p != B:
        x = jnp.pad(x, ((0, b_p - B), (0, 0)))  # zero rows; finite garbage, sliced off
    grid = (b_p // tb,)

    # ---- VMEM budget ----------------------------------------------------------
    # Single-buffered resident weight + bias, double-buffered x / out tiles.
    w_bytes = In * Out * jnp.dtype(w.dtype).itemsize
    b_bytes = Out * 4
    x_tile_bytes = tb * In * jnp.dtype(x.dtype).itemsize
    o_tile_bytes = tb * Out * 4
    needed = w_bytes + b_bytes + 2 * x_tile_bytes + 2 * o_tile_bytes
    vmem_limit = int(min(max(needed + (4 << 20), 32 << 20), 56 << 20))

    out = pl.pallas_call(
        _slp_kernel,
        out_shape=jax.ShapeDtypeStruct((b_p, Out), jnp.float32),
        grid=grid,
        in_specs=[
            # x tile: streamed along the batch grid axis (default double-buffer).
            pl.BlockSpec((tb, In), lambda i: (i, 0)),
            # Weight: resident (constant index_map) -> single buffer, DMA'd once.
            pl.BlockSpec((In, Out), lambda i: (0, 0),
                         pipeline_mode=pl.Buffered(buffer_count=1)),
            # Bias: resident, single buffer.
            pl.BlockSpec((1, Out), lambda i: (0, 0),
                         pipeline_mode=pl.Buffered(buffer_count=1)),
        ],
        out_specs=pl.BlockSpec((tb, Out), lambda i: (i, 0)),
        compiler_params=pltpu.CompilerParams(
            dimension_semantics=("parallel",),  # batch tiles are independent
            vmem_limit_bytes=vmem_limit,
        ),
    )(x, w, b2)

    return out[:B] if b_p != B else out


def _reference(x, w, b, matmul_dtype=None):
    if matmul_dtype is not None:
        z = jnp.dot(x.astype(matmul_dtype), w.astype(matmul_dtype),
                    preferred_element_type=jnp.float32) + b.astype(jnp.float32)
    else:
        z = x @ w + b
    return jax.nn.log_softmax(z, axis=1)


if __name__ == "__main__":
    key = jax.random.PRNGKey(0)
    kx, kw, kb, kx2 = jax.random.split(key, 4)

    # Small shapes consistent with the module: batch=8, input_size=32, output=16.
    batch, input_size, output_size = 8, 32, 16
    bound = 1.0 / (input_size ** 0.5)
    w = jax.random.uniform(kw, (input_size, output_size),
                           minval=-bound, maxval=bound, dtype=jnp.float32)
    b = jax.random.uniform(kb, (output_size,),
                           minval=-bound, maxval=bound, dtype=jnp.float32)
    x = jax.random.normal(kx, (batch, input_size), dtype=jnp.float32)

    # Pre-cast the weight once (hoisted out of the per-call hot path).
    w_bf16 = w.astype(jnp.bfloat16)

    # Check 1: default bf16-matmul path, small batch (grid == 1).
    out = jax.block_until_ready(single_layer_perception(x, w_bf16, b))
    ref_bf16 = _reference(x, w, b, matmul_dtype=jnp.bfloat16)
    ref_f32 = _reference(x, w, b)
    assert out.shape == (batch, output_size)
    assert jnp.allclose(out, ref_bf16, atol=1e-5, rtol=1e-5), "mismatch vs bf16 reference"
    assert jnp.allclose(out, ref_f32, atol=5e-2, rtol=5e-2), "drift vs f32 reference too large"

    # Check 2: batch tiling (grid > 1) and padded batch rows.
    batch2 = 200
    x2 = jax.random.normal(kx2, (batch2, input_size), dtype=jnp.float32)
    out2 = jax.block_until_ready(single_layer_perception(x2, w_bf16, b, block_b=64))
    assert out2.shape == (batch2, output_size)
    assert jnp.allclose(out2, _reference(x2, w, b, matmul_dtype=jnp.bfloat16),
                        atol=1e-5, rtol=1e-5), "mismatch vs reference (tiled)"

    # Check 3: exact-f32 path keeps the original nn.Linear numerics.
    out3 = jax.block_until_ready(single_layer_perception(x, w, b, matmul_dtype=None))
    assert jnp.allclose(out3, ref_f32, atol=1e-5, rtol=1e-5), "mismatch vs f32 reference"

    print("KERNEL_OK")
</pallas_src>

<mosaic_0001>
module attributes {stable_mosaic.version = 11 : i64} {
  func.func @_slp_kernel(%arg0: i32, %arg1: memref<8x32xf32, #tpu.memory_space<vmem>>, %arg2: memref<32x16xbf16, #tpu.memory_space<vmem>>, %arg3: memref<1x16xf32, #tpu.memory_space<vmem>>, %arg4: memref<8x16xf32, #tpu.memory_space<vmem>>) attributes {dimension_semantics = [#tpu.dimension_semantics<parallel>], iteration_bounds = array<i64: 1>, scalar_prefetch = 0 : i64, scratch_operands = 0 : i64, tpu.core_type = #tpu.core_type<tc>, window_params = [{transform_indices = @transform_0, window_bounds = array<i64: 8, 32>}, {pipeline_mode = #tpu.pipeline_mode<synchronous>, transform_indices = @transform_1, window_bounds = array<i64: 32, 16>}, {pipeline_mode = #tpu.pipeline_mode<synchronous>, transform_indices = @transform_2, window_bounds = array<i64: 1, 16>}, {transform_indices = @transform_3, window_bounds = array<i64: 8, 16>}]} {
    %c0 = arith.constant 0 : index
    %c0_0 = arith.constant 0 : index
    %0 = vector.load %arg1[%c0, %c0_0] : memref<8x32xf32, #tpu.memory_space<vmem>>, vector<8x32xf32>
    %1 = arith.truncf %0 : vector<8x32xf32> to vector<8x32xbf16>
    %c0_1 = arith.constant 0 : index
    %c0_2 = arith.constant 0 : index
    %2 = vector.load %arg2[%c0_1, %c0_2] : memref<32x16xbf16, #tpu.memory_space<vmem>>, vector<32x16xbf16>
    %cst = arith.constant dense<0.000000e+00> : vector<8x16xf32>
    %3 = tpu.matmul %1, %2, %cst {dimension_numbers = #tpu.dot_dimension_numbers<[1], [0], [0], [1], [0, 0, 1, 1], [], []>} : vector<8x32xbf16>, vector<32x16xbf16>, vector<8x16xf32> -> vector<8x16xf32>
    %c0_3 = arith.constant 0 : index
    %c0_4 = arith.constant 0 : index
    %4 = vector.load %arg3[%c0_3, %c0_4] : memref<1x16xf32, #tpu.memory_space<vmem>>, vector<1x16xf32>
    %5 = vector.broadcast %4 : vector<1x16xf32> to vector<8x16xf32>
    %6 = arith.addf %3, %5 : vector<8x16xf32>
    %cst_5 = arith.constant dense<0xFF800000> : vector<8xf32>
    %7 = vector.multi_reduction <maximumf>, %6, %cst_5 [1] : vector<8x16xf32> to vector<8xf32>
    %8 = vector.shape_cast %7 : vector<8xf32> to vector<8x1xf32>
    %9 = vector.broadcast %8 : vector<8x1xf32> to vector<8x16xf32>
    %10 = arith.subf %6, %9 : vector<8x16xf32>
    %11 = math.exp %10 : vector<8x16xf32>
    %cst_6 = arith.constant dense<0.000000e+00> : vector<8xf32>
    %12 = vector.multi_reduction <add>, %11, %cst_6 [1] : vector<8x16xf32> to vector<8xf32>
    %13 = vector.shape_cast %12 : vector<8xf32> to vector<8x1xf32>
    %14 = math.log %13 : vector<8x1xf32>
    %15 = vector.broadcast %14 : vector<8x1xf32> to vector<8x16xf32>
    %16 = arith.subf %10, %15 : vector<8x16xf32>
    %c0_7 = arith.constant 0 : index
    %c0_8 = arith.constant 0 : index
    %17 = vector.load %arg4[%c0_7, %c0_8] : memref<8x16xf32, #tpu.memory_space<vmem>>, vector<8x16xf32>
    tpu.vector_store %arg4[%c0_7, %c0_8], %16 {strides = array<i32>} : memref<8x16xf32, #tpu.memory_space<vmem>>, vector<8x16xf32>,
    return
  }
  func.func @transform_0(%arg0: i32) -> (i32, i32) {
    %c0_i32 = arith.constant 0 : i32
    %c0_i32_0 = arith.constant 0 : i32
    return %arg0, %c0_i32 : i32, i32
  }
  func.func @transform_1(%arg0: i32) -> (i32, i32) {
    %c0_i32 = arith.constant 0 : i32
    %c0_i32_0 = arith.constant 0 : i32
    %c0_i32_1 = arith.constant 0 : i32
    return %c0_i32, %c0_i32_0 : i32, i32
  }
  func.func @transform_2(%arg0: i32) -> (i32, i32) {
    %c0_i32 = arith.constant 0 : i32
    %c0_i32_0 = arith.constant 0 : i32
    %c0_i32_1 = arith.constant 0 : i32
    return %c0_i32, %c0_i32_0 : i32, i32
  }
  func.func @transform_3(%arg0: i32) -> (i32, i32) {
    %c0_i32 = arith.constant 0 : i32
    %c0_i32_0 = arith.constant 0 : i32
    return %arg0, %c0_i32 : i32, i32
  }
}

</mosaic_0001>

<llo_original>
// kernel: single_layer_perception.1
$region0: #{single_layer_perception.1}
  #allocation0 [shape = 'u32[]', space=smem, size = 0x4, offset = 0x4, fixed_abs, tag = 'smem constant byte address 0x4 - core index']
  #allocation1 [shape = 'u32[144,128]{1,0:T(1,128)}', space=vmem, size = 0x12000, scoped, tag = 'internal scratch']
  %s0 = inlined_call_operand.vmem [shape: f32[8,32], index: 0, kind: input, shape index: {}]
  %s1 = inlined_call_operand.vmem [shape: bf16[32,16], index: 1, kind: input, shape index: {}]
  %s2 = inlined_call_operand.vmem [shape: f32[1,16], index: 2, kind: input, shape index: {}]
  %s3 = inlined_call_operand.hbm [shape: f32[8,16], index: 3, kind: output, shape index: {}]
  %s4 = sld [smem:[#allocation0]]
  $region22: #{single_layer_perception.1} parent=0
    _
  %s6 = ssub.s32 1, %s4
  %s7 = scalar_select 0, %s6, %s4
  $region1: #{single_layer_perception.1} parent=0
    #allocation2 [shape = 'u8[4096]{0}', space=vmem, size = 0x1000, scoped, tag = 'output window, operand 0, single buffered']
    #allocation3 [shape = 's32[1]{0}', space=sflag, size = 0x4, scoped, tag = 'scoped memory for single_layer_perception.1']
    %8 = vsyncpa [#allocation3], 0
    // Predicated region
    $region2: #{single_layer_perception.1} parent=1 // pred_check
      _
    $region3: #{single_layer_perception.1} parent=1 // pred_check_branch
      %10 = sbr.rel (0) target = $region5
    $region4: #{single_layer_perception.1} parent=1 // pred_region
      _
    $region5: #{single_layer_perception.1} parent=1 // pred_fallthru
      _
    // Predicated region
    $region6: #{single_layer_perception.1} parent=1 // pred_check
      _
    $region7: #{single_layer_perception.1} parent=1 // pred_check_branch
      %12 = sbr.rel (0) target = $region9
    $region8: #{single_layer_perception.1} parent=1 // pred_region
      _
    $region9: #{single_layer_perception.1} parent=1 // pred_fallthru
      _
    // Predicated region
    $region10: #{single_layer_perception.1} parent=1 // pred_check
      _
    $region11: #{single_layer_perception.1} parent=1 // pred_check_branch
      %14 = sbr.rel (0) target = $region13
    $region12: #{single_layer_perception.1} parent=1 // pred_region
      _
    $region13: #{single_layer_perception.1} parent=1 // pred_fallthru
      _
    %v16 = vld [vmem:[%s0] sm:$0xff]
    %v17 = vpack.c.bf16 %v16, %v16
    %v18 = vld [vmem:[%s1] sm:$0xf]
    %v19 = vld [vmem:[%s1 + $0x4] sm:$0xf]
    %v20 = vld [vmem:[%s1 + $0x8] sm:$0xf]
    %v21 = vld [vmem:[%s1 + $0xc] sm:$0xf]
    %v22 = vld [vmem:[%s2] sm:$0x1]
    %v24 = vlaneseq
    %v25 = vshrl.u32 %v24, 7
    %v26 = vsub.s32 0, %v25
    %v27 = vrot.slane %v22, %v26
    %v33 = vunpack.c.l.b16 %v18
    %v34 = vunpack.c.l.b16 %v19
    %v35 = vunpack.c.l.b16 %v20
    %v36 = vunpack.c.l.b16 %v21
    %v37 = vpack.c.b16 %v34, %v33
    %v38 = vpack.c.b16 %v36, %v35
    %vm41 = vcmask 261120
    %v43 = vsel %vm41, %v17, 0
    %45 = vmatprep.subr.bf16.mxu0 0
    %46 = vmatpush1.bf16.msra.mxu0 %v37
    %47 = vmatprep.subr.bf16.mxu0 0
    %48 = vmatpush1.bf16.msra.mxu0 %v38
    %49 = vmatprep.subr.bf16.mxu0 0
    %50 = vmatpush1.bf16.msra.mxu0 0
    %51 = vmatprep.subr.bf16.mxu0 0
    %52 = vmatpush1.bf16.msra.mxu0 0
    %53 = vmatprep.subr.bf16.mxu0 0
    %54 = vmatpush1.bf16.msra.mxu0 0
    %55 = vmatprep.subr.bf16.mxu0 0
    %56 = vmatpush1.bf16.msra.mxu0 0
    %57 = vmatprep.subr.bf16.mxu0 0
    %58 = vmatpush1.bf16.msra.mxu0 0
    %59 = vmatprep.subr.bf16.mxu0 0
    %60 = vmatpush1.bf16.msra.mxu0 0
    %61 = vmatprep.subr.bf16.mxu0 0
    %62 = vmatpush1.bf16.msra.mxu0 0
    %63 = vmatprep.subr.bf16.mxu0 0
    %64 = vmatpush1.bf16.msra.mxu0 0
    %65 = vmatprep.subr.bf16.mxu0 0
    %66 = vmatpush1.bf16.msra.mxu0 0
    %67 = vmatprep.subr.bf16.mxu0 0
    %68 = vmatpush1.bf16.msra.mxu0 0
    %69 = vmatprep.subr.bf16.mxu0 0
    %70 = vmatpush1.bf16.msra.mxu0 0
    %71 = vmatprep.subr.bf16.mxu0 0
    %72 = vmatpush1.bf16.msra.mxu0 0
    %73 = vmatprep.subr.bf16.mxu0 0
    %74 = vmatpush1.bf16.msra.mxu0 0
    %75 = vmatprep.subr.bf16.mxu0 0
    %76 = vmatpush1.bf16.msra.mxu0 0
    %77 = vmatprep.mubr.bf16.mxu0 0
    %78 = vmatmul.mubr.bf16.gmra.mrb[0].mxu0 %v43
    %v79 = vpop.f32.mrb[0].mxu0
    %v80 = vadd.f32 %v27, %v79
    %v81 = vpop.f32.mrb[0].mxu0
    %v82 = vpop.f32.mrb[0].mxu0
    %v83 = vpop.f32.mrb[0].mxu0
    %84 = vdwg.mxu0
    %vm85 = vcmask 130048
    %v86 = vsel %vm85, %v80, -inf
    %87 = vmax.xlane.f32.xlu0 %v86
    %v88 = vpop.xlane.xlu0 %87
    %v89 = vsub.f32 %v80, %v88
    %v90 = vmul.f32 %v89, 1.442695
    %v91 = vpow.pop %v90
    %v92 = vsel %vm85, %v91, 0.0
    %93 = vadd.xlane.f32.xlu0 %v92
    %v94 = vpop.xlane.xlu0 %93
    %v95 = vlog2.pop %v94
    %v96 = vmul.f32 %v95, 0.6931472
    %v97 = vsub.f32 %v89, %v96
    %98 = vst.msk [vmem:[#allocation2] sm:$0xff] %vm85, %v97
    // Predicated region
    $region14: #{single_layer_perception.1} parent=1 // pred_check
      _
    $region15: #{single_layer_perception.1} parent=1 // pred_check_branch
      %100 = sbr.rel (0) target = $region17
    $region16: #{single_layer_perception.1} parent=1 // pred_region
      %s102 = ssub.s32 128, 128
      %103 = vsyncadd [#allocation3], %s102
      %s105 = sshll.u32 [#allocation2], 4
      %s106 = int_to_ptr.vmem [resolvable:$true] %s105
      %108 = dma.vmem_to_hbm [thread:$0]  %s106, 128, %s3, [#allocation3]
    $region17: #{single_layer_perception.1} parent=1 // pred_fallthru
      _
    // Predicated region
    $region18: #{single_layer_perception.1} parent=1 // pred_check
      _
    $region19: #{single_layer_perception.1} parent=1 // pred_check_branch
      %110 = sbr.rel (0) target = $region21
    $region20: #{single_layer_perception.1} parent=1 // pred_region
      %111 = dma.done [#allocation3], 128
    $region21: #{single_layer_perception.1} parent=1 // pred_fallthru
      _
    %112 = vsyncpa [#allocation3], 1

</llo_original>
